<compile_context>
chip_gen: v7x
topology: tpu7x:2x2x1
jax: 0.10.0
libtpu: 0.0.40
codegen_flags: <defaults>
</compile_context>

<pallas_src>
import functools

import jax
import jax.numpy as jnp
from jax.experimental import pallas as pl
from jax.experimental.pallas import tpu as pltpu

_LANE = 128
_NOUT = 3                       # real output width (fc3 out_features)
_NPAD = 128                     # lane-dense padded output width
_MXU_MAX_IMG_COLS = 4096        # use the fused-matmul path when C*HW_pad <= this
_VMEM_BUF_BUDGET = 36 * 1024 * 1024   # pipelined-buffer budget (fits v7x 64 MiB VMEM)


# ---------------------------------------------------------------------------
# kernels
# ---------------------------------------------------------------------------
def _hiff_mxu_kernel(x_img_ref, x_tex_ref, w_big_ref, w_tex_ref, b_ref, out_ref):
    """Small-image path: whole image branch is one MXU matmul."""
    acc = jnp.dot(x_img_ref[...], w_big_ref[...],
                  preferred_element_type=jnp.float32)
    acc = acc + jnp.dot(x_tex_ref[...], w_tex_ref[...],
                        preferred_element_type=jnp.float32)
    out_ref[...] = (acc + b_ref[...]).astype(out_ref.dtype)


def _hiff_sum_kernel(x_img_ref, x_tex_ref, w_img_ref, w_tex_ref, b_ref, out_ref,
                     *, num_ch, hw_p):
    """Large-image path: per-channel spatial sums sliced straight off the ref."""
    acc = jnp.dot(x_tex_ref[...], w_tex_ref[...],
                  preferred_element_type=jnp.float32) + b_ref[...]
    for c in range(num_ch):                       # C is small & static -> unrolled
        # static, 128-aligned slice of the input window (no full-tile load)
        s = jnp.sum(x_img_ref[:, c * hw_p:(c + 1) * hw_p],
                    axis=-1, keepdims=True)       # (bt, 1)
        acc = acc + s * w_img_ref[c:c + 1, :]     # broadcast (bt,1)*(1,128)
    out_ref[...] = acc.astype(out_ref.dtype)


# ---------------------------------------------------------------------------
# wrapper
# ---------------------------------------------------------------------------
def _pick_batch_tile(B, per_sample_buf_bytes, weight_buf_bytes, batch_tile):
    if batch_tile is not None:
        bt = int(batch_tile)
        if bt >= B:
            bt = B
        else:
            bt = max(8, (bt // 8) * 8)            # respect the (8,128) constraint
    else:
        budget = max(per_sample_buf_bytes, _VMEM_BUF_BUDGET - weight_buf_bytes)
        bt = max(1, budget // per_sample_buf_bytes)
        bt = max(8, (bt // 8) * 8)
        if B >= 16:
            # guarantee >= 2 grid steps so v7x can shard the "parallel" batch
            # axis across both TensorCores (and the pipeline is exercised).
            half = pl.cdiv(B, 2)
            bt = min(bt, max(8, (half // 8) * 8))
    return min(bt, B)


def hiff_forward(x_image, x_texture, params, *, batch_tile=None,
                 force_sum_path=False):
    """x_image: (B, C, H, W) float32 (NCHW as in PyTorch); x_texture: (B, 3)."""
    B, C, H, W = x_image.shape
    hw = H * W
    hw_p = ((hw + _LANE - 1) // _LANE) * _LANE    # lane-align channel stride

    x_img = x_image.reshape(B, C, hw).astype(jnp.float32)
    if hw_p != hw:                                 # zero-pad (no-op for 16x16, 224x224)
        x_img = jnp.pad(x_img, ((0, 0), (0, 0), (0, hw_p - hw)))
    x_img = x_img.reshape(B, C * hw_p)
    x_tex = x_texture.astype(jnp.float32)

    # ---- trace-time folding of the (purely linear) head ----
    w3a = params["w3"][:64, :]                                 # (64, 3)
    w3b = params["w3"][64:, :]                                 # (64, 3)
    w_img = params["wb"] @ params["w1"] @ w3a                  # (C, 3)
    w_tex = params["w2"] @ w3b                                 # (3, 3)
    bias = (params["bb"] @ params["w1"] @ w3a
            + params["b1"] @ w3a
            + params["b2"] @ w3b
            + params["b3"])                                    # (1, 3)

    w_tex_p = jnp.zeros((3, _NPAD), jnp.float32).at[:, :_NOUT].set(w_tex)
    b_p = jnp.zeros((1, _NPAD), jnp.float32).at[:, :_NOUT].set(bias)

    use_mxu = (not force_sum_path) and (C * hw_p <= _MXU_MAX_IMG_COLS)

    if use_mxu:
        # Fold the 1/HW mean + per-channel weight into one big matmul operand;
        # padded spatial columns multiply zeros so they are harmless.
        w_big3 = jnp.repeat(w_img / hw, hw_p, axis=0)          # (C*hw_p, 3)
        w_imgmat = jnp.zeros((C * hw_p, _NPAD),
                             jnp.float32).at[:, :_NOUT].set(w_big3)
        kernel = _hiff_mxu_kernel
        w_img_block = (C * hw_p, _NPAD)
        flops = 2 * B * (C * hw_p + 3) * _NPAD
    else:
        w_imgmat = jnp.zeros((C, _NPAD),
                             jnp.float32).at[:, :_NOUT].set(w_img / hw)
        kernel = functools.partial(_hiff_sum_kernel, num_ch=C, hw_p=hw_p)
        w_img_block = (C, _NPAD)
        flops = B * C * hw_p + 2 * B * (C + 3) * _NPAD

    # ---- batch tile: big, VMEM-budgeted, multiple of 8 ----
    per_sample_buf = 2 * (C * hw_p * 4 + 3 * 4 + _NPAD * 4)    # 2x pipeline buffers
    weight_buf = 2 * (w_img_block[0] * _NPAD + 3 * _NPAD + _NPAD) * 4
    bt = _pick_batch_tile(B, per_sample_buf, weight_buf, batch_tile)
    grid = (pl.cdiv(B, bt),)

    est_vmem = bt * per_sample_buf + weight_buf
    vmem_limit = int(min(112 * 1024 * 1024,
                         max(48 * 1024 * 1024, est_vmem + 8 * 1024 * 1024)))

    weight_hbm_bytes = (w_img_block[0] * _NPAD + 3 * _NPAD + _NPAD) * 4
    cost = pl.CostEstimate(
        flops=int(flops),
        transcendentals=0,
        bytes_accessed=int(B * C * hw_p * 4 + B * 3 * 4 + B * _NPAD * 4
                           + weight_hbm_bytes))

    out = pl.pallas_call(
        kernel,
        out_shape=jax.ShapeDtypeStruct((B, _NPAD), jnp.float32),
        grid=grid,
        in_specs=[
            pl.BlockSpec((bt, C * hw_p), lambda i: (i, 0)),    # image tile
            pl.BlockSpec((bt, 3), lambda i: (i, 0)),           # texture tile
            pl.BlockSpec(w_img_block, lambda i: (0, 0)),       # folded image weights
            pl.BlockSpec((3, _NPAD), lambda i: (0, 0)),        # folded W_tex
            pl.BlockSpec((1, _NPAD), lambda i: (0, 0)),        # fused bias
        ],
        out_specs=pl.BlockSpec((bt, _NPAD), lambda i: (i, 0)),
        compiler_params=pltpu.CompilerParams(
            dimension_semantics=("parallel",),
            vmem_limit_bytes=vmem_limit),
        cost_estimate=cost,
    )(x_img, x_tex, w_imgmat, w_tex_p, b_p)

    return out[:, :_NOUT]


# ---------------------------------------------------------------------------
# parameters / reference
# ---------------------------------------------------------------------------
def make_params(key, c_in):
    ks = jax.random.split(key, 8)
    scale = 0.02
    return {
        # backbone stand-in: Linear C -> 1000 (applied to global-avg-pooled img)
        "wb": scale * jax.random.normal(ks[0], (c_in, 1000), jnp.float32),
        "bb": scale * jax.random.normal(ks[1], (1, 1000), jnp.float32),
        # fc1: 1000 -> 64
        "w1": scale * jax.random.normal(ks[2], (1000, 64), jnp.float32),
        "b1": scale * jax.random.normal(ks[3], (1, 64), jnp.float32),
        # fc2: 3 -> 64
        "w2": scale * jax.random.normal(ks[4], (3, 64), jnp.float32),
        "b2": scale * jax.random.normal(ks[5], (1, 64), jnp.float32),
        # fc3: 128 -> 3
        "w3": scale * jax.random.normal(ks[6], (128, 3), jnp.float32),
        "b3": scale * jax.random.normal(ks[7], (1, 3), jnp.float32),
    }


def hiff_reference(x_image, x_texture, params):
    """Unfused reference matching the PyTorch head exactly (with the backbone
    stand-in = global average pool + Linear C->1000)."""
    B, C, H, W = x_image.shape
    pooled = jnp.mean(x_image.reshape(B, C, H * W), axis=-1)
    feat = pooled @ params["wb"] + params["bb"]
    x1 = feat @ params["w1"] + params["b1"]
    x2 = x_texture.astype(x1.dtype) @ params["w2"] + params["b2"]
    x = jnp.concatenate([x1, x2], axis=1)
    return x @ params["w3"] + params["b3"]


if __name__ == "__main__":
    key = jax.random.PRNGKey(0)
    k_img, k_tex, k_par = jax.random.split(key, 3)

    B, C, H, W = 16, 3, 16, 16
    x_image = jax.random.normal(k_img, (B, C, H, W), jnp.float32)
    x_texture = jax.random.normal(k_tex, (B, 3), jnp.float32)
    params = make_params(k_par, C)

    ref = hiff_reference(x_image, x_texture, params)

    # Path 1: fused MXU-matmul path (auto-selected for small images).  The
    # auto-tiler caps the tile at B/2 so the 2-step grid / pipeline is used.
    out = jax.block_until_ready(hiff_forward(x_image, x_texture, params))
    assert out.shape == (B, 3)
    assert jnp.allclose(out, ref, atol=1e-4, rtol=1e-4), "mxu path mismatch"

    # Path 2: per-channel spatial-sum path (used for large images), forced here
    # at small shapes for coverage; odd batch_tile exercises the 8-row rounding.
    out2 = jax.block_until_ready(
        hiff_forward(x_image, x_texture, params, batch_tile=12,
                     force_sum_path=True))
    assert out2.shape == (B, 3)
    assert jnp.allclose(out2, ref, atol=1e-4, rtol=1e-4), "sum path mismatch"

    print("KERNEL_OK")
</pallas_src>

<mosaic_0001>
module attributes {stable_mosaic.version = 11 : i64} {
  func.func @_hiff_mxu_kernel(%arg0: i32, %arg1: memref<8x768xf32, #tpu.memory_space<vmem>>, %arg2: memref<8x3xf32, #tpu.memory_space<vmem>>, %arg3: memref<768x128xf32, #tpu.memory_space<vmem>>, %arg4: memref<3x128xf32, #tpu.memory_space<vmem>>, %arg5: memref<1x128xf32, #tpu.memory_space<vmem>>, %arg6: memref<8x128xf32, #tpu.memory_space<vmem>>) attributes {dimension_semantics = [#tpu.dimension_semantics<parallel>], iteration_bounds = array<i64: 2>, scalar_prefetch = 0 : i64, scratch_operands = 0 : i64, tpu.core_type = #tpu.core_type<tc>, window_params = [{transform_indices = @transform_0, window_bounds = array<i64: 8, 768>}, {transform_indices = @transform_1, window_bounds = array<i64: 8, 3>}, {pipeline_mode = #tpu.pipeline_mode<synchronous>, transform_indices = @transform_2, window_bounds = array<i64: 768, 128>}, {pipeline_mode = #tpu.pipeline_mode<synchronous>, transform_indices = @transform_3, window_bounds = array<i64: 3, 128>}, {pipeline_mode = #tpu.pipeline_mode<synchronous>, transform_indices = @transform_4, window_bounds = array<i64: 1, 128>}, {transform_indices = @transform_5, window_bounds = array<i64: 8, 128>}]} {
    %c0 = arith.constant 0 : index
    %c0_0 = arith.constant 0 : index
    %0 = vector.load %arg1[%c0, %c0_0] : memref<8x768xf32, #tpu.memory_space<vmem>>, vector<8x768xf32>
    %c0_1 = arith.constant 0 : index
    %c0_2 = arith.constant 0 : index
    %1 = vector.load %arg3[%c0_1, %c0_2] : memref<768x128xf32, #tpu.memory_space<vmem>>, vector<768x128xf32>
    %cst = arith.constant dense<0.000000e+00> : vector<8x128xf32>
    %2 = tpu.matmul %0, %1, %cst {dimension_numbers = #tpu.dot_dimension_numbers<[1], [0], [0], [1], [0, 0, 1, 1], [], []>} : vector<8x768xf32>, vector<768x128xf32>, vector<8x128xf32> -> vector<8x128xf32>
    %c0_3 = arith.constant 0 : index
    %c0_4 = arith.constant 0 : index
    %3 = vector.load %arg2[%c0_3, %c0_4] : memref<8x3xf32, #tpu.memory_space<vmem>>, vector<8x3xf32>
    %c0_5 = arith.constant 0 : index
    %c0_6 = arith.constant 0 : index
    %4 = vector.load %arg4[%c0_5, %c0_6] : memref<3x128xf32, #tpu.memory_space<vmem>>, vector<3x128xf32>
    %cst_7 = arith.constant dense<0.000000e+00> : vector<8x128xf32>
    %5 = tpu.matmul %3, %4, %cst_7 {dimension_numbers = #tpu.dot_dimension_numbers<[1], [0], [0], [1], [0, 0, 1, 1], [], []>} : vector<8x3xf32>, vector<3x128xf32>, vector<8x128xf32> -> vector<8x128xf32>
    %6 = arith.addf %2, %5 : vector<8x128xf32>
    %c0_8 = arith.constant 0 : index
    %c0_9 = arith.constant 0 : index
    %7 = vector.load %arg5[%c0_8, %c0_9] : memref<1x128xf32, #tpu.memory_space<vmem>>, vector<1x128xf32>
    %8 = vector.broadcast %7 : vector<1x128xf32> to vector<8x128xf32>
    %9 = arith.addf %6, %8 : vector<8x128xf32>
    %c0_10 = arith.constant 0 : index
    %c0_11 = arith.constant 0 : index
    %10 = vector.load %arg6[%c0_10, %c0_11] : memref<8x128xf32, #tpu.memory_space<vmem>>, vector<8x128xf32>
    tpu.vector_store %arg6[%c0_10, %c0_11], %9 {strides = array<i32>} : memref<8x128xf32, #tpu.memory_space<vmem>>, vector<8x128xf32>,
    return
  }
  func.func @transform_0(%arg0: i32) -> (i32, i32) {
    %c0_i32 = arith.constant 0 : i32
    %c0_i32_0 = arith.constant 0 : i32
    return %arg0, %c0_i32 : i32, i32
  }
  func.func @transform_1(%arg0: i32) -> (i32, i32) {
    %c0_i32 = arith.constant 0 : i32
    %c0_i32_0 = arith.constant 0 : i32
    return %arg0, %c0_i32 : i32, i32
  }
  func.func @transform_2(%arg0: i32) -> (i32, i32) {
    %c0_i32 = arith.constant 0 : i32
    %c0_i32_0 = arith.constant 0 : i32
    %c0_i32_1 = arith.constant 0 : i32
    return %c0_i32, %c0_i32_0 : i32, i32
  }
  func.func @transform_3(%arg0: i32) -> (i32, i32) {
    %c0_i32 = arith.constant 0 : i32
    %c0_i32_0 = arith.constant 0 : i32
    %c0_i32_1 = arith.constant 0 : i32
    return %c0_i32, %c0_i32_0 : i32, i32
  }
  func.func @transform_4(%arg0: i32) -> (i32, i32) {
    %c0_i32 = arith.constant 0 : i32
    %c0_i32_0 = arith.constant 0 : i32
    %c0_i32_1 = arith.constant 0 : i32
    return %c0_i32, %c0_i32_0 : i32, i32
  }
  func.func @transform_5(%arg0: i32) -> (i32, i32) {
    %c0_i32 = arith.constant 0 : i32
    %c0_i32_0 = arith.constant 0 : i32
    return %arg0, %c0_i32 : i32, i32
  }
}

</mosaic_0001>

<llo_original>
// kernel: tpu_custom_call.1
$region0: #{tpu_custom_call.1}
  #allocation0 [shape = 'u32[]', space=smem, size = 0x4, offset = 0x4, fixed_abs, tag = 'smem constant byte address 0x4 - core index']
  #allocation1 [shape = 'u32[144,128]{1,0:T(1,128)}', space=vmem, size = 0x12000, scoped, tag = 'internal scratch']
  %s0 = inlined_call_operand.hbm [shape: f32[16,768], index: 0, kind: input, shape index: {}]
  %s1 = inlined_call_operand.vmem [shape: f32[16,3], index: 1, kind: input, shape index: {}]
  %s2 = inlined_call_operand.hbm [shape: f32[768,128], index: 2, kind: input, shape index: {}]
  %s3 = inlined_call_operand.vmem [shape: f32[3,128], index: 3, kind: input, shape index: {}]
  %s4 = inlined_call_operand.vmem [shape: f32[1,128], index: 4, kind: input, shape index: {}]
  %s5 = inlined_call_operand.hbm [shape: f32[16,128], index: 5, kind: output, shape index: {}]
  %s6 = sld [smem:[#allocation0]]
  $region61: #{tpu_custom_call.1} parent=0
    _
  %s8 = ssub.s32 1, %s6
  %s9 = scalar_select 0, %s8, %s6
  $region1: #{tpu_custom_call.1} parent=0
    #allocation2 [shape = 'u8[49152]{0}', space=vmem, size = 0xc000, scoped, tag = 'input window, operand 0']
    #allocation3 [shape = 's32[2]{0}', space=sflag, size = 0x8, scoped, tag = 'scoped memory for tpu_custom_call.1']
    #allocation4 [shape = 's32[2]{0}', space=sflag, size = 0x8, scoped, tag = 'scoped memory for tpu_custom_call.1']
    #allocation5 [shape = 'u8[393216]{0}', space=vmem, size = 0x60000, scoped, tag = 'input window, operand 2, single buffered']
    #allocation6 [shape = 's32[1]{0}', space=sflag, size = 0x4, scoped, tag = 'scoped memory for tpu_custom_call.1']
    #allocation7 [shape = 'u8[8192]{0}', space=vmem, size = 0x2000, scoped, tag = 'output window, operand 0']
    %10 = vsyncpa [#allocation3], 0
    %s11 = scalar_lea.sflag [#allocation3], 1
    %12 = vsyncpa %s11, 0
    %13 = vsyncpa [#allocation6], 0
    %14 = vsyncpa [#allocation4], 0
    %s15 = scalar_lea.sflag [#allocation4], 1
    %16 = vsyncpa %s15, 0
    loop: start=0, step=1, limit=4
    $region2: #{tpu_custom_call.1} parent=1 // loop_pre_header
      _
    $region3: #{tpu_custom_call.1} parent=1 // loop_header
      %s18 = sphi 0, %s22
      %p19 = scmp.ge.s32.totalorder %s18, 4
      %s28 = sphi 0, %s30
      %s31 = sphi 0, %s28
      %s32 = sphi 0, %s31
      %s48 = sphi 0, %s32
      %s54 = sphi 0, %s56
      %s57 = sphi 0, %s54
      %s58 = sphi 0, %s57
      %s74 = sphi 0, %s58
      %s78 = sphi 0, %s78
      %s80 = sphi 0, %s78
      %s81 = sphi 0, %s80
      %s95 = sphi 0, %s81
      %s99 = sphi 0, %s99
      %s101 = sphi 0, %s99
      %s102 = sphi 0, %s101
      %s116 = sphi 0, %s102
      %s120 = sphi 0, %s120
      %s122 = sphi 0, %s120
      %s123 = sphi 0, %s122
      %s137 = sphi 0, %s123
      %s143 = sphi 0, %s145
      %s146 = sphi 0, %s143
      %s147 = sphi 0, %s146
      %s163 = sphi 0, %s147
    $region4: #{tpu_custom_call.1} parent=1 // loop_header_branch
      %21 = sbr.rel (%p19) target = $region8
    $region5: #{tpu_custom_call.1} parent=1 // loop_body
      %s23 = ssub.s32 %s18, 1
      %s24 = ssub.s32 %s18, 2
      %s25 = sadd.s32 %s18, 1
      %s26 = ssub.s32 %s18, %s25
      %p27 = scmp.eq.s32.totalorder %s26, 0
      %s29 = sadd.s32 %s28, 1
      %s30 = scalar_select %p27, %s28, %s29
      %p33 = pneg %p27
      %p34 = scmp.eq.s32.totalorder %s18, 1
      %p35 = por %p33, %p34
      %p36 = scmp.ne.s32.totalorder %s28, %s31
      %p37 = scmp.eq.s32.totalorder %s18, 0
      %p38 = por %p36, %p37
      %p39 = scmp.ne.s32.totalorder %s28, %s31
      %p40 = scmp.eq.s32.totalorder %s23, 1
      %p41 = por %p39, %p40
      %p42 = scmp.ne.s32.totalorder %s31, %s32
      %p43 = scmp.eq.s32.totalorder %s23, 0
      %p44 = por %p42, %p43
      %p45 = scmp.ne.s32.totalorder %s31, %s32
      %p46 = scmp.eq.s32.totalorder %s24, 1
      %p47 = por %p45, %p46
      %p49 = scmp.ne.s32.totalorder %s32, %s48
      %p50 = scmp.eq.s32.totalorder %s24, 0
      %p51 = por %p49, %p50
      %s52 = ssub.s32 %s18, %s25
      %p53 = scmp.eq.s32.totalorder %s52, 0
      %s55 = sadd.s32 %s54, 1
      %s56 = scalar_select %p53, %s54, %s55
      %p59 = pneg %p53
      %p60 = scmp.eq.s32.totalorder %s18, 1
      %p61 = por %p59, %p60
      %p62 = scmp.ne.s32.totalorder %s54, %s57
      %p63 = scmp.eq.s32.totalorder %s18, 0
      %p64 = por %p62, %p63
      %p65 = scmp.ne.s32.totalorder %s54, %s57
      %p66 = scmp.eq.s32.totalorder %s23, 1
      %p67 = por %p65, %p66
      %p68 = scmp.ne.s32.totalorder %s57, %s58
      %p69 = scmp.eq.s32.totalorder %s23, 0
      %p70 = por %p68, %p69
      %p71 = scmp.ne.s32.totalorder %s57, %s58
      %p72 = scmp.eq.s32.totalorder %s24, 1
      %p73 = por %p71, %p72
      %p75 = scmp.ne.s32.totalorder %s58, %s74
      %p76 = scmp.eq.s32.totalorder %s24, 0
      %p77 = por %p75, %p76
      %s79 = sadd.s32 %s78, 1
      %p82 = scmp.eq.s32.totalorder %s18, 1
      %p83 = scmp.ne.s32.totalorder %s78, %s80
      %p84 = scmp.eq.s32.totalorder %s18, 0
      %p85 = por %p83, %p84
      %p86 = scmp.ne.s32.totalorder %s78, %s80
      %p87 = scmp.eq.s32.totalorder %s23, 1
      %p88 = por %p86, %p87
      %p89 = scmp.ne.s32.totalorder %s80, %s81
      %p90 = scmp.eq.s32.totalorder %s23, 0
      %p91 = por %p89, %p90
      %p92 = scmp.ne.s32.totalorder %s80, %s81
      %p93 = scmp.eq.s32.totalorder %s24, 1
      %p94 = por %p92, %p93
      %p96 = scmp.ne.s32.totalorder %s81, %s95
      %p97 = scmp.eq.s32.totalorder %s24, 0
      %p98 = por %p96, %p97
      %s100 = sadd.s32 %s99, 1
      %p103 = scmp.eq.s32.totalorder %s18, 1
      %p104 = scmp.ne.s32.totalorder %s99, %s101
      %p105 = scmp.eq.s32.totalorder %s18, 0
      %p106 = por %p104, %p105
      %p107 = scmp.ne.s32.totalorder %s99, %s101
      %p108 = scmp.eq.s32.totalorder %s23, 1
      %p109 = por %p107, %p108
      %p110 = scmp.ne.s32.totalorder %s101, %s102
      %p111 = scmp.eq.s32.totalorder %s23, 0
      %p112 = por %p110, %p111
      %p113 = scmp.ne.s32.totalorder %s101, %s102
      %p114 = scmp.eq.s32.totalorder %s24, 1
      %p115 = por %p113, %p114
      %p117 = scmp.ne.s32.totalorder %s102, %s116
      %p118 = scmp.eq.s32.totalorder %s24, 0
      %p119 = por %p117, %p118
      %s121 = sadd.s32 %s120, 1
      %p124 = scmp.eq.s32.totalorder %s18, 1
      %p125 = scmp.ne.s32.totalorder %s120, %s122
      %p126 = scmp.eq.s32.totalorder %s18, 0
      %p127 = por %p125, %p126
      %p128 = scmp.ne.s32.totalorder %s120, %s122
      %p129 = scmp.eq.s32.totalorder %s23, 1
      %p130 = por %p128, %p129
      %p131 = scmp.ne.s32.totalorder %s122, %s123
      %p132 = scmp.eq.s32.totalorder %s23, 0
      %p133 = por %p131, %p132
      %p134 = scmp.ne.s32.totalorder %s122, %s123
      %p135 = scmp.eq.s32.totalorder %s24, 1
      %p136 = por %p134, %p135
      %p138 = scmp.ne.s32.totalorder %s123, %s137
      %p139 = scmp.eq.s32.totalorder %s24, 0
      %p140 = por %p138, %p139
      %s141 = ssub.s32 %s18, %s25
      %p142 = scmp.eq.s32.totalorder %s141, 0
      %s144 = sadd.s32 %s143, 1
      %s145 = scalar_select %p142, %s143, %s144
      %p148 = pneg %p142
      %p149 = scmp.eq.s32.totalorder %s18, 1
      %p150 = por %p148, %p149
      %p151 = scmp.ne.s32.totalorder %s143, %s146
      %p152 = scmp.eq.s32.totalorder %s18, 0
      %p153 = por %p151, %p152
      %p154 = scmp.ne.s32.totalorder %s143, %s146
      %p155 = scmp.eq.s32.totalorder %s23, 1
      %p156 = por %p154, %p155
      %p157 = scmp.ne.s32.totalorder %s146, %s147
      %p158 = scmp.eq.s32.totalorder %s23, 0
      %p159 = por %p157, %p158
      %p160 = scmp.ne.s32.totalorder %s146, %s147
      %p161 = scmp.eq.s32.totalorder %s24, 1
      %p162 = por %p160, %p161
      %p164 = scmp.ne.s32.totalorder %s147, %s163
      %p165 = scmp.eq.s32.totalorder %s24, 0
      %p166 = por %p164, %p165
      %p167 = scmp.le.s32.totalorder 1, %s18
      %p168 = scmp.lt.s32.totalorder %s18, 3
      %p169 = pnand %p167, %p168
      %p170 = pneg %p169
      // Predicated region
      $region9: #{tpu_custom_call.1} parent=5 // pred_check
        _
      $region10: #{tpu_custom_call.1} parent=5 // pred_check_branch
        %172 = sbr.rel (%p169) target = $region12
      $region11: #{tpu_custom_call.1} parent=5 // pred_region
        %s173 = ssub.s32 %s18, 1
        // Predicated region
        $region13: #{tpu_custom_call.1} parent=11 // pred_check
          %p174 = pneg %p91
        $region14: #{tpu_custom_call.1} parent=11 // pred_check_branch
          %176 = sbr.rel (%p174) target = $region16
        $region15: #{tpu_custom_call.1} parent=11 // pred_region
          %s178 = ssub.s32 12288, 12288
          %179 = vsyncadd [#allocation6], %s178
          %s180 = sshll.u32 [#allocation5], 4
          %s181 = int_to_ptr.vmem [resolvable:$true] %s180
          %186 = dma.hbm_to_vmem [thread:$0]  %s2, 12288, %s181, [#allocation6], 128, 128, 8
        $region16: #{tpu_custom_call.1} parent=11 // pred_fallthru
          _
        // Predicated region
        $region17: #{tpu_custom_call.1} parent=11 // pred_check
          %p187 = pneg %p112
        $region18: #{tpu_custom_call.1} parent=11 // pred_check_branch
          %189 = sbr.rel (%p187) target = $region20
        $region19: #{tpu_custom_call.1} parent=11 // pred_region
          _
        $region20: #{tpu_custom_call.1} parent=11 // pred_fallthru
          _
        // Predicated region
        $region21: #{tpu_custom_call.1} parent=11 // pred_check
          %p190 = pneg %p133
        $region22: #{tpu_custom_call.1} parent=11 // pred_check_branch
          %192 = sbr.rel (%p190) target = $region24
        $region23: #{tpu_custom_call.1} parent=11 // pred_region
          _
        $region24: #{tpu_custom_call.1} parent=11 // pred_fallthru
          _
      $region12: #{tpu_custom_call.1} parent=5 // pred_fallthru
        _
      %p193 = scmp.lt.s32.totalorder %s18, 2
      // Predicated region
      $region25: #{tpu_custom_call.1} parent=5 // pred_check
        %p194 = pneg %p193
      $region26: #{tpu_custom_call.1} parent=5 // pred_check_branch
        %196 = sbr.rel (%p194) target = $region28
      $region27: #{tpu_custom_call.1} parent=5 // pred_region
        // Predicated region
        $region29: #{tpu_custom_call.1} parent=27 // pred_check
          %p197 = pneg %p38
        $region30: #{tpu_custom_call.1} parent=27 // pred_check_branch
          %199 = sbr.rel (%p197) target = $region32
        $region31: #{tpu_custom_call.1} parent=27 // pred_region
          %s200 = sand.u32 %s28, 1
          %s201 = scalar_lea.sflag [#allocation3], %s200
          %s202 = sand.u32 %s28, 1
          %s203 = smul.addr %s202, 48
          %s204 = scalar_lea.vmem [#allocation2], %s203
          %s206 = ssub.s32 768, 768
          %207 = vsyncadd %s201, %s206
          %s208 = smul.addr %s18, 6
          %s209 = smul.addr %s208, 128
          %s210 = scalar_lea.hbm %s0, %s209
          %s212 = sshll.u32 %s204, 4
          %s213 = int_to_ptr.vmem [resolvable:$true] %s212
          %215 = dma.hbm_to_vmem [thread:$0]  %s210, 768, %s213, %s201
        $region32: #{tpu_custom_call.1} parent=27 // pred_fallthru
          _
        // Predicated region
        $region33: #{tpu_custom_call.1} parent=27 // pred_check
          %p216 = pneg %p64
        $region34: #{tpu_custom_call.1} parent=27 // pred_check_branch
          %218 = sbr.rel (%p216) target = $region36
        $region35: #{tpu_custom_call.1} parent=27 // pred_region
          %p219 = scmp.lt.s32.totalorder %s18, 1
          %s220 = scalar_select %p219, %s18, 1
          %s221 = smul.addr %s220, 8
          %s222 = scalar_lea.vmem %s1, %s221
        $region36: #{tpu_custom_call.1} parent=27 // pred_fallthru
          _
      $region28: #{tpu_custom_call.1} parent=5 // pred_fallthru
        _
      %p223 = scmp.le.s32.totalorder 1, %s18
      %p224 = scmp.lt.s32.totalorder %s18, 3
      %p225 = pnand %p223, %p224
      %p226 = pneg %p225
      // Predicated region
      $region37: #{tpu_custom_call.1} parent=5 // pred_check
        _
      $region38: #{tpu_custom_call.1} parent=5 // pred_check_branch
        %228 = sbr.rel (%p225) target = $region40
      $region39: #{tpu_custom_call.1} parent=5 // pred_region
        %s229 = ssub.s32 %s18, 1
        %s230 = sand.u32 %s31, 1
        %s231 = scalar_lea.sflag [#allocation3], %s230
        %s232 = sand.u32 %s31, 1
        %s233 = smul.addr %s232, 48
        %s234 = scalar_lea.vmem [#allocation2], %s233
        // Predicated region
        $region41: #{tpu_custom_call.1} parent=39 // pred_check
          %p235 = pneg %p44
        $region42: #{tpu_custom_call.1} parent=39 // pred_check_branch
          %237 = sbr.rel (%p235) target = $region44
        $region43: #{tpu_custom_call.1} parent=39 // pred_region
          %238 = dma.done %s231, 768
        $region44: #{tpu_custom_call.1} parent=39 // pred_fallthru
          _
        // Predicated region
        $region45: #{tpu_custom_call.1} parent=39 // pred_check
          %p239 = pneg %p91
        $region46: #{tpu_custom_call.1} parent=39 // pred_check_branch
          %241 = sbr.rel (%p239) target = $region48
        $region47: #{tpu_custom_call.1} parent=39 // pred_region
          %242 = dma.done [#allocation6], 12288
        $region48: #{tpu_custom_call.1} parent=39 // pred_fallthru
          _
        %s243 = sand.u32 %s31, 1
        %s244 = scalar_lea.sflag [#allocation3], %s243
        %s245 = sand.u32 %s31, 1
        %s246 = smul.addr %s245, 48
        %s247 = scalar_lea.vmem [#allocation2], %s246
        %p248 = pneg %p44
        %p249 = pneg %p41
        %p250 = scmp.lt.s32.totalorder %s23, 1
        %s251 = scalar_select %p250, %s23, 1
        %s252 = smul.addr %s251, 8
        %s253 = scalar_lea.vmem %s1, %s252
        %p254 = pneg %p70
        %p255 = pneg %p67
        %p256 = pneg %p91
        %p257 = pneg %p88
        %p258 = pneg %p112
        %p259 = pneg %p109
        %p260 = pneg %p133
        %p261 = pneg %p130
        %p262 = pneg %p159
        %p263 = pneg %p156
        %s264 = sand.u32 %s146, 1
        %s265 = scalar_lea.sflag [#allocation4], %s264
        %s266 = sand.u32 %s146, 1
        %s267 = smul.addr %s266, 8
        %s268 = scalar_lea.vmem [#allocation7], %s267
        %p269 = scmp.lt.s32.totalorder %s23, 1
        %s270 = scalar_select %p269, %s23, 1
        %s271 = smul.addr %s270, 8
        %s272 = scalar_lea.vmem %s1, %s271
        %v273 = vld [vmem:[%s234] sm:$0xff]
        %v274 = vld [vmem:[%s234 + $0x8] sm:$0xff]
        %v275 = vld [vmem:[%s234 + $0x10] sm:$0xff]
        %v276 = vld [vmem:[%s234 + $0x18] sm:$0xff]
        %v277 = vld [vmem:[%s234 + $0x20] sm:$0xff]
        %v278 = vld [vmem:[%s234 + $0x28] sm:$0xff]
        %v279 = vld [vmem:[#allocation5] sm:$0xff]
        %v280 = vld [vmem:[#allocation5 + $0x8] sm:$0xff]
        %v281 = vld [vmem:[#allocation5 + $0x10] sm:$0xff]
        %v282 = vld [vmem:[#allocation5 + $0x18] sm:$0xff]
        %v283 = vld [vmem:[#allocation5 + $0x20] sm:$0xff]
        %v284 = vld [vmem:[#allocation5 + $0x28] sm:$0xff]
        %v285 = vld [vmem:[#allocation5 + $0x30] sm:$0xff]
        %v286 = vld [vmem:[#allocation5 + $0x38] sm:$0xff]
        %v287 = vld [vmem:[#allocation5 + $0x40] sm:$0xff]
        %v288 = vld [vmem:[#allocation5 + $0x48] sm:$0xff]
        %v289 = vld [vmem:[#allocation5 + $0x50] sm:$0xff]
        %v290 = vld [vmem:[#allocation5 + $0x58] sm:$0xff]
        %v291 = vld [vmem:[#allocation5 + $0x60] sm:$0xff]
        %v292 = vld [vmem:[#allocation5 + $0x68] sm:$0xff]
        %v293 = vld [vmem:[#allocation5 + $0x70] sm:$0xff]
        %v294 = vld [vmem:[#allocation5 + $0x78] sm:$0xff]
        %v295 = vld [vmem:[#allocation5 + $0x80] sm:$0xff]
        %v296 = vld [vmem:[#allocation5 + $0x88] sm:$0xff]
        %v297 = vld [vmem:[#allocation5 + $0x90] sm:$0xff]
        %v298 = vld [vmem:[#allocation5 + $0x98] sm:$0xff]
        %v299 = vld [vmem:[#allocation5 + $0xa0] sm:$0xff]
        %v300 = vld [vmem:[#allocation5 + $0xa8] sm:$0xff]
        %v301 = vld [vmem:[#allocation5 + $0xb0] sm:$0xff]
        %v302 = vld [vmem:[#allocation5 + $0xb8] sm:$0xff]
        %v303 = vld [vmem:[#allocation5 + $0xc0] sm:$0xff]
        %v304 = vld [vmem:[#allocation5 + $0xc8] sm:$0xff]
        %v305 = vld [vmem:[#allocation5 + $0xd0] sm:$0xff]
        %v306 = vld [vmem:[#allocation5 + $0xd8] sm:$0xff]
        %v307 = vld [vmem:[#allocation5 + $0xe0] sm:$0xff]
        %v308 = vld [vmem:[#allocation5 + $0xe8] sm:$0xff]
        %v309 = vld [vmem:[#allocation5 + $0xf0] sm:$0xff]
        %v310 = vld [vmem:[#allocation5 + $0xf8] sm:$0xff]
        %v311 = vld [vmem:[#allocation5 + $0x100] sm:$0xff]
        %v312 = vld [vmem:[#allocation5 + $0x108] sm:$0xff]
        %v313 = vld [vmem:[#allocation5 + $0x110] sm:$0xff]
        %v314 = vld [vmem:[#allocation5 + $0x118] sm:$0xff]
        %v315 = vld [vmem:[#allocation5 + $0x120] sm:$0xff]
        %v316 = vld [vmem:[#allocation5 + $0x128] sm:$0xff]
        %v317 = vld [vmem:[#allocation5 + $0x130] sm:$0xff]
        %v318 = vld [vmem:[#allocation5 + $0x138] sm:$0xff]
        %v319 = vld [vmem:[#allocation5 + $0x140] sm:$0xff]
        %v320 = vld [vmem:[#allocation5 + $0x148] sm:$0xff]
        %v321 = vld [vmem:[#allocation5 + $0x150] sm:$0xff]
        %v322 = vld [vmem:[#allocation5 + $0x158] sm:$0xff]
        %v323 = vld [vmem:[#allocation5 + $0x160] sm:$0xff]
        %v324 = vld [vmem:[#allocation5 + $0x168] sm:$0xff]
        %v325 = vld [vmem:[#allocation5 + $0x170] sm:$0xff]
        %v326 = vld [vmem:[#allocation5 + $0x178] sm:$0xff]
        %v327 = vld [vmem:[#allocation5 + $0x180] sm:$0xff]
        %v328 = vld [vmem:[#allocation5 + $0x188] sm:$0xff]
        %v329 = vld [vmem:[#allocation5 + $0x190] sm:$0xff]
        %v330 = vld [vmem:[#allocation5 + $0x198] sm:$0xff]
        %v331 = vld [vmem:[#allocation5 + $0x1a0] sm:$0xff]
        %v332 = vld [vmem:[#allocation5 + $0x1a8] sm:$0xff]
        %v333 = vld [vmem:[#allocation5 + $0x1b0] sm:$0xff]
        %v334 = vld [vmem:[#allocation5 + $0x1b8] sm:$0xff]
        %v335 = vld [vmem:[#allocation5 + $0x1c0] sm:$0xff]
        %v336 = vld [vmem:[#allocation5 + $0x1c8] sm:$0xff]
        %v337 = vld [vmem:[#allocation5 + $0x1d0] sm:$0xff]
        %v338 = vld [vmem:[#allocation5 + $0x1d8] sm:$0xff]
        %v339 = vld [vmem:[#allocation5 + $0x1e0] sm:$0xff]
        %v340 = vld [vmem:[#allocation5 + $0x1e8] sm:$0xff]
        %v341 = vld [vmem:[#allocation5 + $0x1f0] sm:$0xff]
        %v342 = vld [vmem:[#allocation5 + $0x1f8] sm:$0xff]
        %v343 = vld [vmem:[#allocation5 + $0x200] sm:$0xff]
        %v344 = vld [vmem:[#allocation5 + $0x208] sm:$0xff]
        %v345 = vld [vmem:[#allocation5 + $0x210] sm:$0xff]
        %v346 = vld [vmem:[#allocation5 + $0x218] sm:$0xff]
        %v347 = vld [vmem:[#allocation5 + $0x220] sm:$0xff]
        %v348 = vld [vmem:[#allocation5 + $0x228] sm:$0xff]
        %v349 = vld [vmem:[#allocation5 + $0x230] sm:$0xff]
        %v350 = vld [vmem:[#allocation5 + $0x238] sm:$0xff]
        %v351 = vld [vmem:[#allocation5 + $0x240] sm:$0xff]
        %v352 = vld [vmem:[#allocation5 + $0x248] sm:$0xff]
        %v353 = vld [vmem:[#allocation5 + $0x250] sm:$0xff]
        %v354 = vld [vmem:[#allocation5 + $0x258] sm:$0xff]
        %v355 = vld [vmem:[#allocation5 + $0x260] sm:$0xff]
        %v356 = vld [vmem:[#allocation5 + $0x268] sm:$0xff]
        %v357 = vld [vmem:[#allocation5 + $0x270] sm:$0xff]
        %v358 = vld [vmem:[#allocation5 + $0x278] sm:$0xff]
        %v359 = vld [vmem:[#allocation5 + $0x280] sm:$0xff]
        %v360 = vld [vmem:[#allocation5 + $0x288] sm:$0xff]
        %v361 = vld [vmem:[#allocation5 + $0x290] sm:$0xff]
        %v362 = vld [vmem:[#allocation5 + $0x298] sm:$0xff]
        %v363 = vld [vmem:[#allocation5 + $0x2a0] sm:$0xff]
        %v364 = vld [vmem:[#allocation5 + $0x2a8] sm:$0xff]
        %v365 = vld [vmem:[#allocation5 + $0x2b0] sm:$0xff]
        %v366 = vld [vmem:[#allocation5 + $0x2b8] sm:$0xff]
        %v367 = vld [vmem:[#allocation5 + $0x2c0] sm:$0xff]
        %v368 = vld [vmem:[#allocation5 + $0x2c8] sm:$0xff]
        %v369 = vld [vmem:[#allocation5 + $0x2d0] sm:$0xff]
        %v370 = vld [vmem:[#allocation5 + $0x2d8] sm:$0xff]
        %v371 = vld [vmem:[#allocation5 + $0x2e0] sm:$0xff]
        %v372 = vld [vmem:[#allocation5 + $0x2e8] sm:$0xff]
        %v373 = vld [vmem:[#allocation5 + $0x2f0] sm:$0xff]
        %v374 = vld [vmem:[#allocation5 + $0x2f8] sm:$0xff]
        %v375 = vld [vmem:[%s272] sm:$0xff]
        %v376 = vld [vmem:[%s3] sm:$0x7]
        %vm377 = vcmask 23552
        %v379 = vsel %vm377, %v375, 0
        %vm381 = vcmask 1042432
        %v383 = vsel %vm381, %v376, 0
        %385 = vmatprep.subr.mxu0 0.0
        %386 = vmatpush1.msra.mxu0 %v383
        %387 = vmatprep.subr.mxu0 0.0
        %388 = vmatpush1.msra.mxu0 0.0
        %389 = vmatprep.subr.mxu0 0.0
        %390 = vmatpush1.msra.mxu0 0.0
        %391 = vmatprep.subr.mxu0 0.0
        %392 = vmatpush1.msra.mxu0 0.0
        %393 = vmatprep.subr.mxu0 0.0
        %394 = vmatpush1.msra.mxu0 0.0
        %395 = vmatprep.subr.mxu0 0.0
        %396 = vmatpush1.msra.mxu0 0.0
        %397 = vmatprep.subr.mxu0 0.0
        %398 = vmatpush1.msra.mxu0 0.0
        %399 = vmatprep.subr.mxu0 0.0
        %400 = vmatpush1.msra.mxu0 0.0
        %401 = vmatprep.subr.mxu0 0.0
        %402 = vmatpush1.msra.mxu0 0.0
        %403 = vmatprep.subr.mxu0 0.0
        %404 = vmatpush1.msra.mxu0 0.0
        %405 = vmatprep.subr.mxu0 0.0
        %406 = vmatpush1.msra.mxu0 0.0
        %407 = vmatprep.subr.mxu0 0.0
        %408 = vmatpush1.msra.mxu0 0.0
        %409 = vmatprep.subr.mxu0 0.0
        %410 = vmatpush1.msra.mxu0 0.0
        %411 = vmatprep.subr.mxu0 0.0
        %412 = vmatpush1.msra.mxu0 0.0
        %413 = vmatprep.subr.mxu0 0.0
        %414 = vmatpush1.msra.mxu0 0.0
        %415 = vmatprep.subr.mxu0 0.0
        %416 = vmatpush1.msra.mxu0 0.0
        %417 = vmatprep.subr.mxu0 0.0
        %418 = vmatpush1.msra.mxu0 0.0
        %419 = vmatprep.subr.mxu0 0.0
        %420 = vmatpush1.msra.mxu0 0.0
        %421 = vmatprep.subr.mxu0 0.0
        %422 = vmatpush1.msra.mxu0 0.0
        %423 = vmatprep.subr.mxu0 0.0
        %424 = vmatpush1.msra.mxu0 0.0
        %425 = vmatprep.subr.mxu0 0.0
        %426 = vmatpush1.msra.mxu0 0.0
        %427 = vmatprep.subr.mxu0 0.0
        %428 = vmatpush1.msra.mxu0 0.0
        %429 = vmatprep.subr.mxu0 0.0
        %430 = vmatpush1.msra.mxu0 0.0
        %431 = vmatprep.subr.mxu0 0.0
        %432 = vmatpush1.msra.mxu0 0.0
        %433 = vmatprep.subr.mxu0 0.0
        %434 = vmatpush1.msra.mxu0 0.0
        %435 = vmatprep.subr.mxu0 0.0
        %436 = vmatpush1.msra.mxu0 0.0
        %437 = vmatprep.subr.mxu0 0.0
        %438 = vmatpush1.msra.mxu0 0.0
        %439 = vmatprep.subr.mxu0 0.0
        %440 = vmatpush1.msra.mxu0 0.0
        %441 = vmatprep.subr.mxu0 0.0
        %442 = vmatpush1.msra.mxu0 0.0
        %443 = vmatprep.subr.mxu0 0.0
        %444 = vmatpush1.msra.mxu0 0.0
        %445 = vmatprep.subr.mxu0 0.0
        %446 = vmatpush1.msra.mxu0 0.0
        %447 = vmatprep.subr.mxu0 0.0
        %448 = vmatpush1.msra.mxu0 0.0
        %449 = vmatprep.mubr.f32.mxu0 0.0
        %450 = vmatmul.mubr.f32.gmra.mrb[0].mxu0 %v379
        %v451 = vpop.f32.mrb[0].mxu0
        %v452 = vadd.f32 0.0, %v451
        %v453 = vpop.f32.mrb[0].mxu0
        %454 = vdwg.mxu0
        %455 = vmatprep.subr.mxu0 0.0
        %456 = vmatpush1.msra.mxu0 %v279
        %457 = vmatprep.subr.mxu0 0.0
        %458 = vmatpush1.msra.mxu0 %v280
        %459 = vmatprep.subr.mxu0 0.0
        %460 = vmatpush1.msra.mxu0 %v281
        %461 = vmatprep.subr.mxu0 0.0
        %462 = vmatpush1.msra.mxu0 %v282
        %463 = vmatprep.subr.mxu0 0.0
        %464 = vmatpush1.msra.mxu0 %v283
        %465 = vmatprep.subr.mxu0 0.0
        %466 = vmatpush1.msra.mxu0 %v284
        %467 = vmatprep.subr.mxu0 0.0
        %468 = vmatpush1.msra.mxu0 %v285
        %469 = vmatprep.subr.mxu0 0.0
        %470 = vmatpush1.msra.mxu0 %v286
        %471 = vmatprep.subr.mxu0 0.0
        %472 = vmatpush1.msra.mxu0 %v287
        %473 = vmatprep.subr.mxu0 0.0
        %474 = vmatpush1.msra.mxu0 %v288
        %475 = vmatprep.subr.mxu0 0.0
        %476 = vmatpush1.msra.mxu0 %v289
        %477 = vmatprep.subr.mxu0 0.0
        %478 = vmatpush1.msra.mxu0 %v290
        %479 = vmatprep.subr.mxu0 0.0
        %480 = vmatpush1.msra.mxu0 %v291
        %481 = vmatprep.subr.mxu0 0.0
        %482 = vmatpush1.msra.mxu0 %v292
        %483 = vmatprep.subr.mxu0 0.0
        %484 = vmatpush1.msra.mxu0 %v293
        %485 = vmatprep.subr.mxu0 0.0
        %486 = vmatpush1.msra.mxu0 %v294
        %487 = vmatprep.subr.mxu0 0.0
        %488 = vmatpush1.msra.mxu0 %v295
        %489 = vmatprep.subr.mxu0 0.0
        %490 = vmatpush1.msra.mxu0 %v296
        %491 = vmatprep.subr.mxu0 0.0
        %492 = vmatpush1.msra.mxu0 %v297
        %493 = vmatprep.subr.mxu0 0.0
        %494 = vmatpush1.msra.mxu0 %v298
        %495 = vmatprep.subr.mxu0 0.0
        %496 = vmatpush1.msra.mxu0 %v299
        %497 = vmatprep.subr.mxu0 0.0
        %498 = vmatpush1.msra.mxu0 %v300
        %499 = vmatprep.subr.mxu0 0.0
        %500 = vmatpush1.msra.mxu0 %v301
        %501 = vmatprep.subr.mxu0 0.0
        %502 = vmatpush1.msra.mxu0 %v302
        %503 = vmatprep.subr.mxu0 0.0
        %504 = vmatpush1.msra.mxu0 %v303
        %505 = vmatprep.subr.mxu0 0.0
        %506 = vmatpush1.msra.mxu0 %v304
        %507 = vmatprep.subr.mxu0 0.0
        %508 = vmatpush1.msra.mxu0 %v305
        %509 = vmatprep.subr.mxu0 0.0
        %510 = vmatpush1.msra.mxu0 %v306
        %511 = vmatprep.subr.mxu0 0.0
        %512 = vmatpush1.msra.mxu0 %v307
        %513 = vmatprep.subr.mxu0 0.0
        %514 = vmatpush1.msra.mxu0 %v308
        %515 = vmatprep.subr.mxu0 0.0
        %516 = vmatpush1.msra.mxu0 %v309
        %517 = vmatprep.subr.mxu0 0.0
        %518 = vmatpush1.msra.mxu0 %v310
        %519 = vmatprep.mubr.f32.mxu0 %v274
        %520 = vmatmul.mubr.f32.gmra.mrb[0].mxu0 %v273
        %v521 = vpop.f32.mrb[0].mxu0
        %v522 = vadd.f32 %v452, %v521
        %v523 = vpop.f32.mrb[0].mxu0
        %524 = vdwg.mxu0
        %525 = vmatprep.subr.mxu0 0.0
        %526 = vmatpush1.msra.mxu0 %v311
        %527 = vmatprep.subr.mxu0 0.0
        %528 = vmatpush1.msra.mxu0 %v312
        %529 = vmatprep.subr.mxu0 0.0
        %530 = vmatpush1.msra.mxu0 %v313
        %531 = vmatprep.subr.mxu0 0.0
        %532 = vmatpush1.msra.mxu0 %v314
        %533 = vmatprep.subr.mxu0 0.0
        %534 = vmatpush1.msra.mxu0 %v315
        %535 = vmatprep.subr.mxu0 0.0
        %536 = vmatpush1.msra.mxu0 %v316
        %537 = vmatprep.subr.mxu0 0.0
        %538 = vmatpush1.msra.mxu0 %v317
        %539 = vmatprep.subr.mxu0 0.0
        %540 = vmatpush1.msra.mxu0 %v318
        %541 = vmatprep.subr.mxu0 0.0
        %542 = vmatpush1.msra.mxu0 %v319
        %543 = vmatprep.subr.mxu0 0.0
        %544 = vmatpush1.msra.mxu0 %v320
        %545 = vmatprep.subr.mxu0 0.0
        %546 = vmatpush1.msra.mxu0 %v321
        %547 = vmatprep.subr.mxu0 0.0
        %548 = vmatpush1.msra.mxu0 %v322
        %549 = vmatprep.subr.mxu0 0.0
        %550 = vmatpush1.msra.mxu0 %v323
        %551 = vmatprep.subr.mxu0 0.0
        %552 = vmatpush1.msra.mxu0 %v324
        %553 = vmatprep.subr.mxu0 0.0
        %554 = vmatpush1.msra.mxu0 %v325
        %555 = vmatprep.subr.mxu0 0.0
        %556 = vmatpush1.msra.mxu0 %v326
        %557 = vmatprep.subr.mxu0 0.0
        %558 = vmatpush1.msra.mxu0 %v327
        %559 = vmatprep.subr.mxu0 0.0
        %560 = vmatpush1.msra.mxu0 %v328
        %561 = vmatprep.subr.mxu0 0.0
        %562 = vmatpush1.msra.mxu0 %v329
        %563 = vmatprep.subr.mxu0 0.0
        %564 = vmatpush1.msra.mxu0 %v330
        %565 = vmatprep.subr.mxu0 0.0
        %566 = vmatpush1.msra.mxu0 %v331
        %567 = vmatprep.subr.mxu0 0.0
        %568 = vmatpush1.msra.mxu0 %v332
        %569 = vmatprep.subr.mxu0 0.0
        %570 = vmatpush1.msra.mxu0 %v333
        %571 = vmatprep.subr.mxu0 0.0
        %572 = vmatpush1.msra.mxu0 %v334
        %573 = vmatprep.subr.mxu0 0.0
        %574 = vmatpush1.msra.mxu0 %v335
        %575 = vmatprep.subr.mxu0 0.0
        %576 = vmatpush1.msra.mxu0 %v336
        %577 = vmatprep.subr.mxu0 0.0
        %578 = vmatpush1.msra.mxu0 %v337
        %579 = vmatprep.subr.mxu0 0.0
        %580 = vmatpush1.msra.mxu0 %v338
        %581 = vmatprep.subr.mxu0 0.0
        %582 = vmatpush1.msra.mxu0 %v339
        %583 = vmatprep.subr.mxu0 0.0
        %584 = vmatpush1.msra.mxu0 %v340
        %585 = vmatprep.subr.mxu0 0.0
        %586 = vmatpush1.msra.mxu0 %v341
        %587 = vmatprep.subr.mxu0 0.0
        %588 = vmatpush1.msra.mxu0 %v342
        %589 = vmatprep.mubr.f32.mxu0 %v276
        %590 = vmatmul.mubr.f32.gmra.mrb[0].mxu0 %v275
        %v591 = vpop.f32.mrb[0].mxu0
        %v592 = vadd.f32 %v522, %v591
        %v593 = vpop.f32.mrb[0].mxu0
        %594 = vdwg.mxu0
        %595 = vmatprep.subr.mxu0 0.0
        %596 = vmatpush1.msra.mxu0 %v343
        %597 = vmatprep.subr.mxu0 0.0
        %598 = vmatpush1.msra.mxu0 %v344
        %599 = vmatprep.subr.mxu0 0.0
        %600 = vmatpush1.msra.mxu0 %v345
        %601 = vmatprep.subr.mxu0 0.0
        %602 = vmatpush1.msra.mxu0 %v346
        %603 = vmatprep.subr.mxu0 0.0
        %604 = vmatpush1.msra.mxu0 %v347
        %605 = vmatprep.subr.mxu0 0.0
        %606 = vmatpush1.msra.mxu0 %v348
        %607 = vmatprep.subr.mxu0 0.0
        %608 = vmatpush1.msra.mxu0 %v349
        %609 = vmatprep.subr.mxu0 0.0
        %610 = vmatpush1.msra.mxu0 %v350
        %611 = vmatprep.subr.mxu0 0.0
        %612 = vmatpush1.msra.mxu0 %v351
        %613 = vmatprep.subr.mxu0 0.0
        %614 = vmatpush1.msra.mxu0 %v352
        %615 = vmatprep.subr.mxu0 0.0
        %616 = vmatpush1.msra.mxu0 %v353
        %617 = vmatprep.subr.mxu0 0.0
        %618 = vmatpush1.msra.mxu0 %v354
        %619 = vmatprep.subr.mxu0 0.0
        %620 = vmatpush1.msra.mxu0 %v355
        %621 = vmatprep.subr.mxu0 0.0
        %622 = vmatpush1.msra.mxu0 %v356
        %623 = vmatprep.subr.mxu0 0.0
        %624 = vmatpush1.msra.mxu0 %v357
        %625 = vmatprep.subr.mxu0 0.0
        %626 = vmatpush1.msra.mxu0 %v358
        %627 = vmatprep.subr.mxu0 0.0
        %628 = vmatpush1.msra.mxu0 %v359
        %629 = vmatprep.subr.mxu0 0.0
        %630 = vmatpush1.msra.mxu0 %v360
        %631 = vmatprep.subr.mxu0 0.0
        %632 = vmatpush1.msra.mxu0 %v361
        %633 = vmatprep.subr.mxu0 0.0
        %634 = vmatpush1.msra.mxu0 %v362
        %635 = vmatprep.subr.mxu0 0.0
        %636 = vmatpush1.msra.mxu0 %v363
        %637 = vmatprep.subr.mxu0 0.0
        %638 = vmatpush1.msra.mxu0 %v364
        %639 = vmatprep.subr.mxu0 0.0
        %640 = vmatpush1.msra.mxu0 %v365
        %641 = vmatprep.subr.mxu0 0.0
        %642 = vmatpush1.msra.mxu0 %v366
        %643 = vmatprep.subr.mxu0 0.0
        %644 = vmatpush1.msra.mxu0 %v367
        %645 = vmatprep.subr.mxu0 0.0
        %646 = vmatpush1.msra.mxu0 %v368
        %647 = vmatprep.subr.mxu0 0.0
        %648 = vmatpush1.msra.mxu0 %v369
        %649 = vmatprep.subr.mxu0 0.0
        %650 = vmatpush1.msra.mxu0 %v370
        %651 = vmatprep.subr.mxu0 0.0
        %652 = vmatpush1.msra.mxu0 %v371
        %653 = vmatprep.subr.mxu0 0.0
        %654 = vmatpush1.msra.mxu0 %v372
        %655 = vmatprep.subr.mxu0 0.0
        %656 = vmatpush1.msra.mxu0 %v373
        %657 = vmatprep.subr.mxu0 0.0
        %658 = vmatpush1.msra.mxu0 %v374
        %659 = vmatprep.mubr.f32.mxu0 %v278
        %660 = vmatmul.mubr.f32.gmra.mrb[0].mxu0 %v277
        %v661 = vpop.f32.mrb[0].mxu0
        %v662 = vadd.f32 %v592, %v661
        %v663 = vpop.f32.mrb[0].mxu0
        %664 = vdwg.mxu0
        %v665 = vld [vmem:[%s4] sm:$0x1]
        %v667 = vlaneseq
        %v668 = vshrl.u32 %v667, 7
        %v669 = vsub.s32 0, %v668
        %v670 = vrot.slane %v665, %v669
        %v672 = vadd.f32 %v662, %v670
        %673 = vst [vmem:[%s268] sm:$0xff] %v672
        %s674 = sand.u32 %s146, 1
        %s675 = scalar_lea.sflag [#allocation4], %s674
        %s676 = sand.u32 %s146, 1
        %s677 = smul.addr %s676, 8
        %s678 = scalar_lea.vmem [#allocation7], %s677
        // Predicated region
        $region49: #{tpu_custom_call.1} parent=39 // pred_check
          %p679 = pneg %p156
        $region50: #{tpu_custom_call.1} parent=39 // pred_check_branch
          %681 = sbr.rel (%p679) target = $region52
        $region51: #{tpu_custom_call.1} parent=39 // pred_region
          %s683 = ssub.s32 128, 128
          %684 = vsyncadd %s675, %s683
          %s685 = smul.addr %s23, 128
          %s686 = scalar_lea.hbm %s5, %s685
          %s688 = sshll.u32 %s678, 4
          %s689 = int_to_ptr.vmem [resolvable:$true] %s688
          %691 = dma.vmem_to_hbm [thread:$0]  %s689, 128, %s686, %s675
        $region52: #{tpu_custom_call.1} parent=39 // pred_fallthru
          _
      $region40: #{tpu_custom_call.1} parent=5 // pred_fallthru
        _
      %p692 = scmp.le.s32.totalorder 2, %s18
      // Predicated region
      $region53: #{tpu_custom_call.1} parent=5 // pred_check
        %p693 = pneg %p692
      $region54: #{tpu_custom_call.1} parent=5 // pred_check_branch
        %695 = sbr.rel (%p693) target = $region56
      $region55: #{tpu_custom_call.1} parent=5 // pred_region
        %s696 = ssub.s32 %s18, 2
        // Predicated region
        $region57: #{tpu_custom_call.1} parent=55 // pred_check
          %p697 = pneg %p162
        $region58: #{tpu_custom_call.1} parent=55 // pred_check_branch
          %699 = sbr.rel (%p697) target = $region60
        $region59: #{tpu_custom_call.1} parent=55 // pred_region
          %s700 = sand.u32 %s147, 1
          %s701 = scalar_lea.sflag [#allocation4], %s700
          %s702 = sand.u32 %s147, 1
          %s703 = smul.addr %s702, 8
          %s704 = scalar_lea.vmem [#allocation7], %s703
          %705 = dma.done %s701, 128
        $region60: #{tpu_custom_call.1} parent=55 // pred_fallthru
          _
      $region56: #{tpu_custom_call.1} parent=5 // pred_fallthru
        _
    $region6: #{tpu_custom_call.1} parent=1 // loop_footer
      %s22 = sadd.s32 1, %s18
    $region7: #{tpu_custom_call.1} parent=1 // loop_footer_branch
      %17 = sbr.rel target = $region3
    $region8: #{tpu_custom_call.1} parent=1 // loop_exit
      _
    %706 = vsyncpa [#allocation3], 1
    %s707 = scalar_lea.sflag [#allocation3], 1
    %708 = vsyncpa %s707, 1
    %709 = vsyncpa [#allocation6], 1
    %710 = vsyncpa [#allocation4], 1
    %s711 = scalar_lea.sflag [#allocation4], 1
    %712 = vsyncpa %s711, 1

</llo_original>
